<compile_context>
chip_gen: v5e
topology: v5e:2x2
jax: 0.10.0
libtpu: 0.0.40
codegen_flags: <defaults>
</compile_context>

<pallas_src>
import functools

import jax
import jax.numpy as jnp
from jax.experimental import pallas as pl
from jax.experimental.pallas import tpu as pltpu


def _tv_partial_kernel(mask_h_ref, x_ref, out_ref, *, row_len):
    """One (batch-tile, H-tile) block.

    x_ref:      (TB, C, L) with L = TH * W -- H rows flattened into the lane dim.
    mask_h_ref: (1, 1, L - 1) f32 0/1 mask; zero where the "previous element"
                on the flattened axis belongs to the previous row.
    out_ref:    (1, TB, 2) partial [sum dh^2, sum dv^2] for this block.
    row_len:    W (static).
    """
    x = x_ref[...].astype(jnp.float32)

    # Horizontal neighbours: flat pair (p, p-1) is valid iff p % W != 0.
    dh = (x[:, :, 1:] - x[:, :, :-1]) * mask_h_ref[...]
    # Vertical neighbours inside the tile: flat pair (p, p-W), valid for all p >= W.
    dv = x[:, :, row_len:] - x[:, :, :-row_len]

    # Reduce lanes first, then the channel dim, keeping everything 2-D.
    ssh = jnp.sum(jnp.sum(dh * dh, axis=2), axis=1, keepdims=True)  # (TB, 1)
    ssv = jnp.sum(jnp.sum(dv * dv, axis=2), axis=1, keepdims=True)  # (TB, 1)

    out_ref[...] = jnp.concatenate([ssh, ssv], axis=1)[None, :, :]  # (1, TB, 2)


def _choose_tiles(batch, channels, height, width, budget_bytes):
    """Pick (TB, TH).

    Legality:
      - TB divides B and (TB == B or TB % 8 == 0)            [out-spec sublanes]
      - TH divides H and (TH == H or (TH * W) % 128 == 0)    [in-spec lanes]
    Goal: f32 working block TB*C*TH*W*4 <= budget, with >= ~8 grid steps on
    large inputs (pipelining + megacore) and a single step for tiny inputs.
    """
    total_f32 = batch * channels * height * width * 4
    eff_budget = min(budget_bytes, max(total_f32 // 8, 256 << 10))

    legal_tb = [tb for tb in range(1, batch + 1)
                if batch % tb == 0 and (tb == batch or tb % 8 == 0)]
    legal_th = [th for th in range(1, height + 1)
                if height % th == 0 and (th == height or (th * width) % 128 == 0)]

    def f32_block_bytes(tb, th):
        return tb * channels * th * width * 4

    fitting_tb = [tb for tb in legal_tb if f32_block_bytes(tb, height) <= eff_budget]
    if fitting_tb:
        return max(fitting_tb), height

    tb = min(legal_tb)
    fitting_th = [th for th in legal_th if f32_block_bytes(tb, th) <= eff_budget]
    th = max(fitting_th) if fitting_th else min(legal_th)
    # TODO(synk): add a W-tile grid axis (with its own seam correction) for the
    # pathological case where even a single legal (TB, C, TH, W) block exceeds
    # the budget (very wide single rows).
    return tb, th


def tv_calculator(predictions, adv_patch, coefficient=1.0, *,
                  block_budget_bytes=2 << 20):
    """JAX/Pallas equivalent of TVCalculator.forward(predictions, adv_patch).

    `predictions` is unused (kept for API parity with the PyTorch module).
    adv_patch: (B, C, H, W) float (f32 or bf16) array.  Returns a f32 scalar.
    Semantics follow the given module exactly: per-image L2 norms of the
    horizontal/vertical finite differences, summed over the batch, scaled by
    coefficient / numel.
    """
    del predictions  # unused, as in the reference module
    B, C, H, W = adv_patch.shape
    itemsize = jnp.dtype(adv_patch.dtype).itemsize

    tb, th = _choose_tiles(B, C, H, W, block_budget_bytes)
    nb, nh = B // tb, H // th
    lt = th * W

    # Lane-dense layout: flatten (H, W) into the minor dim (free reshape).
    x_flat = adv_patch.reshape(B, C, H * W)

    # 0/1 mask over "current - previous" pairs on the flattened axis: pair j is
    # (flat j+1, flat j); it is a true horizontal neighbour iff (j+1) % W != 0.
    mask_h = ((jnp.arange(1, lt) % W) != 0).astype(jnp.float32).reshape(1, 1, lt - 1)

    # Double-buffered input block + ~8 f32-block-sized elementwise temporaries.
    in_block_bytes = tb * C * lt * itemsize
    f32_block_bytes = tb * C * lt * 4
    vmem_limit = int(min(48 << 20,
                         max(16 << 20, 2 * in_block_bytes + 8 * f32_block_bytes)))

    partials = pl.pallas_call(
        functools.partial(_tv_partial_kernel, row_len=W),
        out_shape=jax.ShapeDtypeStruct((nh, B, 2), jnp.float32),
        grid_spec=pltpu.PrefetchScalarGridSpec(
            num_scalar_prefetch=0,
            grid=(nb, nh),
            in_specs=[
                pl.BlockSpec((1, 1, lt - 1), lambda i, j: (0, 0, 0)),  # wrap mask
                pl.BlockSpec((tb, C, lt), lambda i, j: (i, 0, j)),     # patch block
            ],
            out_specs=pl.BlockSpec((1, tb, 2), lambda i, j: (j, i, 0)),
        ),
        compiler_params=pltpu.CompilerParams(
            dimension_semantics=("parallel", "parallel"),  # no accumulator
            vmem_limit_bytes=vmem_limit,
        ),
    )(mask_h, x_flat)

    ss = jnp.sum(partials, axis=0)         # (B, 2): [sum dh^2, sum dv^2]
    ss_h, ss_v = ss[:, 0], ss[:, 1]

    if nh > 1:
        # Seam correction: the vertical diff between the first row of H-tile j
        # and the last row of H-tile j-1 is visible to neither grid step.
        top = adv_patch[:, :, th::th, :].astype(jnp.float32)                    # rows th, 2*th, ...
        bot = adv_patch[:, :, th - 1::th, :][:, :, :nh - 1, :].astype(jnp.float32)
        ss_v = ss_v + jnp.sum((top - bot) ** 2, axis=(1, 2, 3))

    tv = jnp.sum(jnp.sqrt(ss_h) + jnp.sqrt(ss_v))
    numel = B * C * H * W
    # TODO(synk): wrap in jax.custom_vjp (or fall back to pure jnp under grad)
    # if this is used as a differentiable training loss; pallas_call has no
    # autodiff rule and sqrt(0) has a NaN gradient.
    return (coefficient * tv / numel).astype(jnp.float32)


def _tv_reference(adv_patch, coefficient=1.0):
    # Pure-JAX reference mirroring the PyTorch module for correctness checking.
    tv = 0.0
    for i in range(adv_patch.shape[0]):
        x = adv_patch[i].astype(jnp.float32)
        tv1 = jnp.sqrt(jnp.sum((x[:, :, 1:] - x[:, :, :-1]) ** 2))
        tv2 = jnp.sqrt(jnp.sum((x[:, 1:, :] - x[:, :-1, :]) ** 2))
        tv = tv + tv1 + tv2
    return coefficient * tv / adv_patch.size


if __name__ == "__main__":
    key = jax.random.PRNGKey(0)
    k1, k2, k3 = jax.random.split(key, 3)

    # Case 1: the module's documented small shape (single grid step).
    B, C, H, W = 2, 4, 16, 16
    adv_patch = jax.random.uniform(k1, (B, C, H, W), dtype=jnp.float32)
    predictions = jax.random.normal(k2, (B, 8), dtype=jnp.float32)  # ignored by forward
    out = jax.block_until_ready(tv_calculator(predictions, adv_patch, coefficient=1.0))
    ref = jax.block_until_ready(_tv_reference(adv_patch, coefficient=1.0))
    assert jnp.allclose(out, ref, rtol=1e-5, atol=1e-6), (out, ref)

    # Case 2: single RGB patch (the common B=1 adversarial-patch case) with a
    # small block budget so the H-tile grid axis and the seam correction run.
    patch1 = jax.random.uniform(k3, (1, 3, 64, 64), dtype=jnp.float32)
    out1 = jax.block_until_ready(
        tv_calculator(None, patch1, coefficient=2.5, block_budget_bytes=32 << 10))
    ref1 = jax.block_until_ready(_tv_reference(patch1, coefficient=2.5))
    assert jnp.allclose(out1, ref1, rtol=1e-5, atol=1e-6), (out1, ref1)

    print("KERNEL_OK")
</pallas_src>

<mosaic_0001>
module attributes {stable_mosaic.version = 11 : i64} {
  func.func @_tv_partial_kernel(%arg0: i32, %arg1: i32, %arg2: memref<1x1x255xf32, #tpu.memory_space<vmem>>, %arg3: memref<2x4x256xf32, #tpu.memory_space<vmem>>, %arg4: memref<1x2x2xf32, #tpu.memory_space<vmem>>) attributes {dimension_semantics = [#tpu.dimension_semantics<parallel>, #tpu.dimension_semantics<parallel>], iteration_bounds = array<i64: 1, 1>, scalar_prefetch = 0 : i64, scratch_operands = 0 : i64, tpu.core_type = #tpu.core_type<tc>, window_params = [{pipeline_mode = #tpu.pipeline_mode<synchronous>, transform_indices = @transform_0, window_bounds = array<i64: 1, 1, 255>}, {transform_indices = @transform_1, window_bounds = array<i64: 2, 4, 256>}, {transform_indices = @transform_2, window_bounds = array<i64: 1, 2, 2>}]} {
    %c0 = arith.constant 0 : index
    %c0_0 = arith.constant 0 : index
    %c0_1 = arith.constant 0 : index
    %0 = vector.load %arg3[%c0, %c0_0, %c0_1] : memref<2x4x256xf32, #tpu.memory_space<vmem>>, vector<2x4x256xf32>
    %1 = vector.extract_strided_slice %0 {offsets = [0, 0, 1], sizes = [2, 4, 255], strides = [1, 1, 1]} : vector<2x4x256xf32> to vector<2x4x255xf32>
    %2 = vector.extract_strided_slice %0 {offsets = [0, 0, 0], sizes = [2, 4, 255], strides = [1, 1, 1]} : vector<2x4x256xf32> to vector<2x4x255xf32>
    %3 = arith.subf %1, %2 : vector<2x4x255xf32>
    %c0_2 = arith.constant 0 : index
    %c0_3 = arith.constant 0 : index
    %c0_4 = arith.constant 0 : index
    %4 = vector.load %arg2[%c0_2, %c0_3, %c0_4] : memref<1x1x255xf32, #tpu.memory_space<vmem>>, vector<1x1x255xf32>
    %5 = vector.broadcast %4 : vector<1x1x255xf32> to vector<2x4x255xf32>
    %6 = arith.mulf %3, %5 : vector<2x4x255xf32>
    %7 = vector.extract_strided_slice %0 {offsets = [0, 0, 16], sizes = [2, 4, 240], strides = [1, 1, 1]} : vector<2x4x256xf32> to vector<2x4x240xf32>
    %8 = vector.extract_strided_slice %0 {offsets = [0, 0, 0], sizes = [2, 4, 240], strides = [1, 1, 1]} : vector<2x4x256xf32> to vector<2x4x240xf32>
    %9 = arith.subf %7, %8 : vector<2x4x240xf32>
    %10 = arith.mulf %6, %6 : vector<2x4x255xf32>
    %cst = arith.constant dense<0.000000e+00> : vector<2x4xf32>
    %11 = vector.multi_reduction <add>, %10, %cst [2] : vector<2x4x255xf32> to vector<2x4xf32>
    %cst_5 = arith.constant dense<0.000000e+00> : vector<2xf32>
    %12 = vector.multi_reduction <add>, %11, %cst_5 [1] : vector<2x4xf32> to vector<2xf32>
    %13 = vector.shape_cast %12 : vector<2xf32> to vector<2x1xf32>
    %14 = arith.mulf %9, %9 : vector<2x4x240xf32>
    %cst_6 = arith.constant dense<0.000000e+00> : vector<2x4xf32>
    %15 = vector.multi_reduction <add>, %14, %cst_6 [2] : vector<2x4x240xf32> to vector<2x4xf32>
    %cst_7 = arith.constant dense<0.000000e+00> : vector<2xf32>
    %16 = vector.multi_reduction <add>, %15, %cst_7 [1] : vector<2x4xf32> to vector<2xf32>
    %17 = vector.shape_cast %16 : vector<2xf32> to vector<2x1xf32>
    %18 = tpu.concatenate %13, %17 in 1 : vector<2x1xf32>, vector<2x1xf32> -> vector<2x2xf32>
    %19 = vector.shape_cast %18 : vector<2x2xf32> to vector<1x2x2xf32>
    %c0_8 = arith.constant 0 : index
    %c0_9 = arith.constant 0 : index
    %c0_10 = arith.constant 0 : index
    %20 = vector.load %arg4[%c0_8, %c0_9, %c0_10] : memref<1x2x2xf32, #tpu.memory_space<vmem>>, vector<1x2x2xf32>
    tpu.vector_store %arg4[%c0_8, %c0_9, %c0_10], %19 {strides = array<i32>} : memref<1x2x2xf32, #tpu.memory_space<vmem>>, vector<1x2x2xf32>,
    return
  }
  func.func @transform_0(%arg0: i32, %arg1: i32) -> (i32, i32, i32) {
    %c0_i32 = arith.constant 0 : i32
    %c0_i32_0 = arith.constant 0 : i32
    %c0_i32_1 = arith.constant 0 : i32
    %c0_i32_2 = arith.constant 0 : i32
    return %c0_i32, %c0_i32_0, %c0_i32_1 : i32, i32, i32
  }
  func.func @transform_1(%arg0: i32, %arg1: i32) -> (i32, i32, i32) {
    %c0_i32 = arith.constant 0 : i32
    %c0_i32_0 = arith.constant 0 : i32
    return %arg0, %c0_i32, %arg1 : i32, i32, i32
  }
  func.func @transform_2(%arg0: i32, %arg1: i32) -> (i32, i32, i32) {
    %c0_i32 = arith.constant 0 : i32
    %c0_i32_0 = arith.constant 0 : i32
    return %arg1, %arg0, %c0_i32 : i32, i32, i32
  }
}

</mosaic_0001>

<llo_original>
// kernel: tpu_custom_call.1
$region0: #{tpu_custom_call.1}
  #allocation0 [shape = 'u32[]', space=smem, size = 0x4, offset = 0x4, fixed_abs, tag = 'smem constant byte address 0x4 - core index']
  #allocation1 [shape = 'u32[72,128]{1,0:T(1,128)}', space=vmem, size = 0x9000, scoped, tag = 'internal scratch']
  %s0 = inlined_call_operand.hbm [shape: f32[1,1,255], index: 0, kind: input, shape index: {}]
  %s1 = inlined_call_operand.hbm [shape: f32[2,4,256], index: 1, kind: input, shape index: {}]
  %s2 = inlined_call_operand.hbm [shape: f32[1,2,2], index: 2, kind: output, shape index: {}]
  %s3 = sld [smem:[#allocation0]]
  $region26: #{tpu_custom_call.1} parent=0
    _
  %s5 = ssub.s32 1, %s3
  %s6 = scalar_select 0, %s5, %s3
  $region1: #{tpu_custom_call.1} parent=0
    #allocation2 [shape = 'u8[1024]{0}', space=vmem, size = 0x400, scoped, tag = 'input window, operand 0, single buffered']
    #allocation3 [shape = 's32[1]{0}', space=sflag, size = 0x4, scoped, tag = 'scoped memory for tpu_custom_call.1']
    #allocation4 [shape = 's32[1]{0}', space=sflag, size = 0x4, scoped, tag = 'scoped memory for tpu_custom_call.1']
    #allocation5 [shape = 'u8[8192]{0}', space=vmem, size = 0x2000, scoped, tag = 'input window, operand 1, single buffered']
    #allocation6 [shape = 's32[1]{0}', space=sflag, size = 0x4, scoped, tag = 'scoped memory for tpu_custom_call.1']
    #allocation7 [shape = 'u8[1024]{0}', space=vmem, size = 0x400, scoped, tag = 'output window, operand 0, single buffered']
    %7 = vsyncpa [#allocation3], 0
    %8 = vsyncpa [#allocation6], 0
    %9 = vsyncpa [#allocation4], 0
    // Predicated region
    $region2: #{tpu_custom_call.1} parent=1 // pred_check
      _
    $region3: #{tpu_custom_call.1} parent=1 // pred_check_branch
      %11 = sbr.rel (0) target = $region5
    $region4: #{tpu_custom_call.1} parent=1 // pred_region
      %13 = vsyncadd [#allocation3], 0
      %s15 = sshll.u32 %s0, 4
      %s16 = int_to_ptr.hbm [resolvable:$true] %s15
      %s17 = sshll.u32 [#allocation2], 4
      %s18 = int_to_ptr.vmem [resolvable:$true] %s17
      %20 = dma.hbm_to_vmem [thread:$0]  %s16, 32, %s18, [#allocation3]
    $region5: #{tpu_custom_call.1} parent=1 // pred_fallthru
      _
    // Predicated region
    $region6: #{tpu_custom_call.1} parent=1 // pred_check
      _
    $region7: #{tpu_custom_call.1} parent=1 // pred_check_branch
      %22 = sbr.rel (0) target = $region9
    $region8: #{tpu_custom_call.1} parent=1 // pred_region
      %24 = vsyncadd [#allocation6], 0
      %s25 = sshll.u32 %s1, 4
      %s26 = int_to_ptr.hbm [resolvable:$true] %s25
      %s27 = sshll.u32 [#allocation5], 4
      %s28 = int_to_ptr.vmem [resolvable:$true] %s27
      %33 = dma.hbm_to_vmem [thread:$0]  %s26, 256, %s28, [#allocation6], 128, 128, 8
    $region9: #{tpu_custom_call.1} parent=1 // pred_fallthru
      _
    // Predicated region
    $region10: #{tpu_custom_call.1} parent=1 // pred_check
      _
    $region11: #{tpu_custom_call.1} parent=1 // pred_check_branch
      %35 = sbr.rel (0) target = $region13
    $region12: #{tpu_custom_call.1} parent=1 // pred_region
      %37 = dma.done [#allocation3], 32
    $region13: #{tpu_custom_call.1} parent=1 // pred_fallthru
      _
    // Predicated region
    $region14: #{tpu_custom_call.1} parent=1 // pred_check
      _
    $region15: #{tpu_custom_call.1} parent=1 // pred_check_branch
      %39 = sbr.rel (0) target = $region17
    $region16: #{tpu_custom_call.1} parent=1 // pred_region
      %41 = dma.done [#allocation6], 256
    $region17: #{tpu_custom_call.1} parent=1 // pred_fallthru
      _
    %v42 = vld [vmem:[#allocation5] sm:$0xff]
    %v43 = vld [vmem:[#allocation5 + $0x8] sm:$0xff]
    %46 = vrot.lane.b32.xlu0 %v42, 1
    %v47 = vpop.permute.xlu0 %46
    %48 = vrot.lane.b32.xlu0 %v43, 1
    %v49 = vpop.permute.xlu0 %48
    %v50 = vrot.slane %v47, 4
    %v51 = vrot.slane %v49, 4
    %vm52 = vcmask 7168
    %v53 = vsel %vm52, %v50, %v47
    %v54 = vsel %vm52, %v51, %v49
    %v57 = vsub.f32 %v42, %v53
    %v58 = vsub.f32 %v43, %v54
    %v59 = vld [vmem:[#allocation2] sm:$0x3]
    %v61 = vperm.slane %v59, 0
    %v62 = vperm.slane %v59, 1
    %v63 = vrot.slane %v62, 4
    %vm64 = vcmask 1043456
    %v65 = vsel %vm64, %v61, %v63
    %66 = vrot.lane.b32.xlu0 %v65, 1
    %v67 = vpop.permute.xlu0 %66
    %v68 = vrot.slane %v67, 4
    %v69 = vsel %vm52, %v68, %v67
    %v71 = vmul.f32 %v57, %v69
    %v72 = vmul.f32 %v58, %v69
    %73 = vrot.lane.b32.xlu0 %v42, 16
    %v74 = vpop.permute.xlu0 %73
    %75 = vrot.lane.b32.xlu0 %v43, 16
    %v76 = vpop.permute.xlu0 %75
    %v77 = vrot.slane %v74, 4
    %v78 = vrot.slane %v76, 4
    %vm79 = vcmask 130048
    %v80 = vsel %vm79, %v77, %v74
    %v81 = vsel %vm79, %v78, %v76
    %v84 = vsub.f32 %v42, %v80
    %v85 = vsub.f32 %v43, %v81
    %v86 = vmul.f32 %v71, %v71
    %v87 = vmul.f32 %v72, %v72
    %90 = vst [vmem:[#allocation1] ss:$2 sm:$0xff] %v86
    %v91 = vld.sshfl [vmem:[#allocation1] sm:$0xff pattern:$0x75316420]
    %v92 = vld.sshfl [vmem:[#allocation1 + $0x8] sm:$0xff pattern:$0x75316420]
    %s93 = scalar_lea.vmem [#allocation1], 16
    %94 = vst [vmem:[%s93] ss:$2 sm:$0xff] %v87
    %v95 = vld.sshfl [vmem:[#allocation1 + $0x10] sm:$0xff pattern:$0x75316420]
    %v96 = vld.sshfl [vmem:[#allocation1 + $0x18] sm:$0xff pattern:$0x75316420]
    %97 = vrot.lane.b32.xlu0 %v91, 127
    %v98 = vpop.permute.xlu0 %97
    %99 = vrot.lane.b32.xlu0 %v92, 127
    %v100 = vpop.permute.xlu0 %99
    %101 = vrot.lane.b32.xlu0 %v95, 127
    %v102 = vpop.permute.xlu0 %101
    %103 = vrot.lane.b32.xlu0 %v96, 127
    %v104 = vpop.permute.xlu0 %103
    %vm105 = vcmask 1039360
    %v106 = vsel %vm105, %v98, %v100
    %v107 = vsel %vm105, %v102, %v104
    %v112 = vsel %vm64, %v106, 0.0
    %vm113 = vcmask 1035264
    %v114 = vsel %vm113, %v100, 0.0
    %v115 = vadd.f32 %v112, %v114
    %116 = vadd.xlane.f32.xlu0 %v115
    %v117 = vpop.xlane.xlu0 %116
    %v118 = vsel %vm64, %v107, 0.0
    %v119 = vsel %vm113, %v104, 0.0
    %v120 = vadd.f32 %v118, %v119
    %121 = vadd.xlane.f32.xlu0 %v120
    %v122 = vpop.xlane.xlu0 %121
    %v125 = vlaneseq
    %v126 = vand.u32 %v125, 127
    %v127 = vperm.slane %v117, %v126
    %v128 = vperm.slane %v122, %v126
    %vm129 = vcmask 1041409
    %v130 = vsel %vm129, %v128, %v127
    %vm132 = vcmask 25600
    %v133 = vsel %vm132, %v130, 0.0
    %134 = vadd.xlane.f32.xlu0 %v133
    %v135 = vpop.xlane.xlu0 %134
    %v136 = vmul.f32 %v84, %v84
    %v137 = vmul.f32 %v85, %v85
    %140 = vst [vmem:[#allocation1] ss:$2 sm:$0xff] %v136
    %v141 = vld.sshfl [vmem:[#allocation1] sm:$0xff pattern:$0x75316420]
    %v142 = vld.sshfl [vmem:[#allocation1 + $0x8] sm:$0xff pattern:$0x75316420]
    %s143 = scalar_lea.vmem [#allocation1], 16
    %144 = vst [vmem:[%s143] ss:$2 sm:$0xff] %v137
    %v145 = vld.sshfl [vmem:[#allocation1 + $0x10] sm:$0xff pattern:$0x75316420]
    %v146 = vld.sshfl [vmem:[#allocation1 + $0x18] sm:$0xff pattern:$0x75316420]
    %147 = vrot.lane.b32.xlu0 %v141, 112
    %v148 = vpop.permute.xlu0 %147
    %149 = vrot.lane.b32.xlu0 %v142, 112
    %v150 = vpop.permute.xlu0 %149
    %151 = vrot.lane.b32.xlu0 %v145, 112
    %v152 = vpop.permute.xlu0 %151
    %153 = vrot.lane.b32.xlu0 %v146, 112
    %v154 = vpop.permute.xlu0 %153
    %vm155 = vcmask 916480
    %v156 = vsel %vm155, %v148, %v150
    %v157 = vsel %vm155, %v152, %v154
    %v162 = vsel %vm64, %v156, 0.0
    %vm163 = vcmask 912384
    %v164 = vsel %vm163, %v150, 0.0
    %v165 = vadd.f32 %v162, %v164
    %166 = vadd.xlane.f32.xlu0 %v165
    %v167 = vpop.xlane.xlu0 %166
    %v168 = vsel %vm64, %v157, 0.0
    %v169 = vsel %vm163, %v154, 0.0
    %v170 = vadd.f32 %v168, %v169
    %171 = vadd.xlane.f32.xlu0 %v170
    %v172 = vpop.xlane.xlu0 %171
    %v175 = vperm.slane %v167, %v126
    %v176 = vperm.slane %v172, %v126
    %v177 = vsel %vm129, %v176, %v175
    %v179 = vsel %vm132, %v177, 0.0
    %180 = vadd.xlane.f32.xlu0 %v179
    %v181 = vpop.xlane.xlu0 %180
    %v182 = vsel %vm52, %v135, %v181
    %vm183 = vcmask 9216
    %184 = vst.msk [vmem:[#allocation7] sm:$0x3] %vm183, %v182
    // Predicated region
    $region18: #{tpu_custom_call.1} parent=1 // pred_check
      _
    $region19: #{tpu_custom_call.1} parent=1 // pred_check_branch
      %186 = sbr.rel (0) target = $region21
    $region20: #{tpu_custom_call.1} parent=1 // pred_region
      %188 = vsyncadd [#allocation4], 0
      %s190 = sshll.u32 [#allocation7], 4
      %s191 = int_to_ptr.vmem [resolvable:$true] %s190
      %s192 = sshll.u32 %s2, 4
      %s193 = int_to_ptr.hbm [resolvable:$true] %s192
      %195 = dma.vmem_to_hbm [thread:$0]  %s191, 32, %s193, [#allocation4]
    $region21: #{tpu_custom_call.1} parent=1 // pred_fallthru
      _
    // Predicated region
    $region22: #{tpu_custom_call.1} parent=1 // pred_check
      _
    $region23: #{tpu_custom_call.1} parent=1 // pred_check_branch
      %197 = sbr.rel (0) target = $region25
    $region24: #{tpu_custom_call.1} parent=1 // pred_region
      %199 = dma.done [#allocation4], 32
    $region25: #{tpu_custom_call.1} parent=1 // pred_fallthru
      _
    %200 = vsyncpa [#allocation3], 1
    %201 = vsyncpa [#allocation6], 1
    %202 = vsyncpa [#allocation4], 1

</llo_original>
